<compile_context>
chip_gen: v6e
topology: v6e:2x2x1
jax: 0.10.0
libtpu: 0.0.40
codegen_flags: <defaults>
</compile_context>

<pallas_src>
import functools

import jax
import jax.numpy as jnp
from jax import lax
from jax.experimental import pallas as pl
from jax.experimental.pallas import tpu as pltpu


def _attention_pool_kernel(x_ref, w_ref, o_ref, *, tn, p, c, l_valid, pad):
    """One (batch, window-tile) grid step.

    x_ref: (1, C, TN*P)  native NCL slab (channels on sublanes, length on lanes)
    w_ref: (C, C)        logit weight, pre-transposed to w_t[c_in, c_out]
    o_ref: (1, C, TN)    pooled output block (lane-dense when TN % 128 == 0)
    """
    tile_l = tn * p

    x2d = x_ref[0]                                # (C, TILE_L), native dtype
    # On-chip XLU transpose instead of a wrapper-side HBM transpose.
    xt = x2d.T                                    # (TILE_L, C)

    # 1x1 conv over channels == MXU matmul; weight arrives pre-transposed so the
    # MXU contracts it directly (no per-step w.T relayout), f32 accumulation.
    logits = jnp.dot(xt, w_ref[...], preferred_element_type=jnp.float32)  # (TILE_L, C)

    if pad:  # static: only emitted when the padded length exceeds the true length
        t = pl.program_id(1)
        row = lax.broadcasted_iota(jnp.int32, (tile_l, c), 0)
        pos = t * tile_l + row
        logits = jnp.where(pos < l_valid, logits, jnp.float32(-1e30))

    x3 = xt.reshape(tn, p, c)                     # (TN, P, C), native dtype
    logits3 = logits.reshape(tn, p, c)            # (TN, P, C), f32

    # Numerically stable softmax over the pool window (axis=1 == P).
    m = jnp.max(logits3, axis=1, keepdims=True)
    e = jnp.exp(logits3 - m)
    s = jnp.sum(e, axis=1, keepdims=True)
    # EUP reciprocal (otherwise-idle bundle slot) + one Newton step -> f32 accuracy.
    r = pl.reciprocal(s, approx=True)
    r = r * (2.0 - s * r)
    attn = e * r

    pooled = jnp.sum(x3 * attn, axis=1)           # (TN, C), f32 accumulate
    o_ref[0] = pooled.T.astype(o_ref.dtype)       # (C, TN) lane-dense store


def _choose_block_windows(n, p, c):
    """Pick how many pool windows (TN) one grid step handles.

    Budgets the in-kernel f32 working slab (logits / exp are f32 and, for C < 128,
    lane-padded to 128 in vregs/VMEM): keep one (TILE_L, max(C,128)) f32 slab
    around <= 1 MiB so double-buffered blocks + temporaries stay far below the
    32 MiB scoped VMEM (v7x-safe: 64 MiB physical).
    """
    lane_c = max(c, 128)
    budget = 1 << 20
    if n * p * lane_c * 4 <= budget:
        return n                                   # one block spans all windows
    tn_max = max(128, 128 * (budget // (p * lane_c * 4 * 128)))
    num_tiles = -(-n // tn_max)
    tn = -(-n // num_tiles)
    return -(-tn // 128) * 128                     # lane-dense output blocks


@functools.partial(jax.jit, static_argnames=("pool_size", "block_windows"))
def attention_pooling_1d(seq, weight, *, pool_size, block_windows=None):
    """seq: (B, C, L) (PyTorch NCL), weight: (C, C). Returns (B, C, ceil(L/pool_size))."""
    B, C, L = seq.shape
    P = pool_size
    N = -(-L // P)

    TN = _choose_block_windows(N, P, C) if block_windows is None else block_windows
    assert TN == N or TN % 128 == 0, "block_windows must equal N or be a multiple of 128"
    TILE_L = TN * P
    num_tiles = -(-N // TN)
    Npad = num_tiles * TN
    Lp = Npad * P
    pad = Lp - L
    if pad:
        seq = jnp.pad(seq, ((0, 0), (0, 0), (0, pad)))

    # Pre-transpose the (tiny) weight once so the kernel never relayouts it.
    w_t = weight.T.astype(seq.dtype)

    kernel = functools.partial(
        _attention_pool_kernel, tn=TN, p=P, c=C, l_valid=L, pad=pad)

    out = pl.pallas_call(
        kernel,
        out_shape=jax.ShapeDtypeStruct((B, C, Npad), seq.dtype),
        grid_spec=pltpu.PrefetchScalarGridSpec(
            num_scalar_prefetch=0,
            grid=(B, num_tiles),
            in_specs=[
                pl.BlockSpec((1, C, TILE_L), lambda b, t: (b, 0, t)),
                pl.BlockSpec((C, C), lambda b, t: (0, 0)),
            ],
            out_specs=pl.BlockSpec((1, C, TN), lambda b, t: (b, 0, t)),
        ),
        compiler_params=pltpu.CompilerParams(
            dimension_semantics=("parallel", "parallel"),
            vmem_limit_bytes=32 * 1024 * 1024,
        ),
    )(seq, w_t)                                    # (B, C, Npad), already NCL

    if Npad != N:
        out = out[:, :, :N]
    return out                                     # (B, C, N)


def make_params(channels, key):
    # Deterministic init mimicking the module: identity*2 + small noise, bias-free
    # 1x1 conv (mode='full' => full C x C channel-mixing projection).
    noise = 0.05 * jax.random.normal(key, (channels, channels), jnp.float32)
    return 2.0 * jnp.eye(channels, dtype=jnp.float32) + noise


def reference_attention_pooling_1d(seq, weight, pool_size):
    """Pure-JAX reference of the PyTorch forward for verification."""
    B, C, L = seq.shape
    rem = L % pool_size
    pad = (pool_size - rem) % pool_size
    seq_p = jnp.pad(seq, ((0, 0), (0, 0), (0, pad)))
    N = (L + pad) // pool_size
    x = seq_p.reshape(B, C, N, pool_size)                      # (B, C, N, P)
    logits = jnp.einsum("oc,bcnp->bonp", weight, x)
    if pad:
        m = jnp.where(jnp.arange(pool_size) >= rem, -1e30, 0.0)
        logits = logits.at[:, :, N - 1, :].add(m[None, None, :])
    attn = jax.nn.softmax(logits, axis=-1)
    return jnp.sum(x * attn, axis=-1)                          # (B, C, N)


if __name__ == "__main__":
    # SequencePoolerAttention(channel_numbers=[32], stride=[8]) pooling stage.
    channel_numbers = [32]
    stride = [8]
    C, P = channel_numbers[0], stride[0]
    key = jax.random.PRNGKey(0)
    k_seq, k_w = jax.random.split(key)
    weight = make_params(C, k_w)

    # 1) Aligned toy case (single window tile).
    B, L = 2, 64
    seq = jax.random.normal(k_seq, (B, C, L), jnp.float32)     # PyTorch NCL input
    out = jax.block_until_ready(attention_pooling_1d(seq, weight, pool_size=P))
    ref = reference_attention_pooling_1d(seq, weight, P)
    assert out.shape == (B, C, L // P), out.shape
    assert jnp.allclose(out, ref, atol=1e-4, rtol=1e-4), float(jnp.max(jnp.abs(out - ref)))

    # 2) Ragged tail (exercises the in-kernel iota logit mask).
    L2 = 60
    seq2 = jax.random.normal(k_seq, (B, C, L2), jnp.float32)
    out2 = jax.block_until_ready(attention_pooling_1d(seq2, weight, pool_size=P))
    ref2 = reference_attention_pooling_1d(seq2, weight, P)
    assert out2.shape == (B, C, -(-L2 // P)), out2.shape
    assert jnp.allclose(out2, ref2, atol=1e-4, rtol=1e-4), float(jnp.max(jnp.abs(out2 - ref2)))

    # 3) Longer sequence with a forced 128-window tile: exercises the tiled grid
    #    (B x num_tiles), lane-dense (C, 128) output blocks, and padded tail windows.
    L3 = 2000
    seq3 = jax.random.normal(k_seq, (B, C, L3), jnp.float32)
    out3 = jax.block_until_ready(
        attention_pooling_1d(seq3, weight, pool_size=P, block_windows=128))
    ref3 = reference_attention_pooling_1d(seq3, weight, P)
    assert out3.shape == (B, C, L3 // P), out3.shape
    assert jnp.allclose(out3, ref3, atol=1e-4, rtol=1e-4), float(jnp.max(jnp.abs(out3 - ref3)))

    print("KERNEL_OK")
</pallas_src>

<mosaic_0001>
module attributes {stable_mosaic.version = 11 : i64} {
  func.func @_attention_pool_kernel(%arg0: i32, %arg1: i32, %arg2: memref<1x32x64xf32, #tpu.memory_space<vmem>>, %arg3: memref<32x32xf32, #tpu.memory_space<vmem>>, %arg4: memref<1x32x8xf32, #tpu.memory_space<vmem>>) attributes {dimension_semantics = [#tpu.dimension_semantics<parallel>, #tpu.dimension_semantics<parallel>], iteration_bounds = array<i64: 2, 1>, scalar_prefetch = 0 : i64, scratch_operands = 0 : i64, tpu.core_type = #tpu.core_type<tc>, window_params = [{transform_indices = @transform_0, window_bounds = array<i64: 1, 32, 64>}, {pipeline_mode = #tpu.pipeline_mode<synchronous>, transform_indices = @transform_1, window_bounds = array<i64: 32, 32>}, {transform_indices = @transform_2, window_bounds = array<i64: 1, 32, 8>}]} {
    %c0 = arith.constant 0 : index
    %c0_0 = arith.constant 0 : index
    %c0_1 = arith.constant 0 : index
    %0 = vector.load %arg2[%c0, %c0_0, %c0_1] : memref<1x32x64xf32, #tpu.memory_space<vmem>>, vector<1x32x64xf32>
    %1 = vector.shape_cast %0 : vector<1x32x64xf32> to vector<32x64xf32>
    %2 = tpu.transpose %1, [1, 0] : vector<32x64xf32> -> vector<64x32xf32>
    %c0_2 = arith.constant 0 : index
    %c0_3 = arith.constant 0 : index
    %3 = vector.load %arg3[%c0_2, %c0_3] : memref<32x32xf32, #tpu.memory_space<vmem>>, vector<32x32xf32>
    %cst = arith.constant dense<0.000000e+00> : vector<64x32xf32>
    %4 = tpu.matmul %2, %3, %cst {dimension_numbers = #tpu.dot_dimension_numbers<[1], [0], [0], [1], [0, 0, 1, 1], [], []>} : vector<64x32xf32>, vector<32x32xf32>, vector<64x32xf32> -> vector<64x32xf32>
    %5 = vector.shape_cast %2 : vector<64x32xf32> to vector<8x8x32xf32>
    %6 = vector.shape_cast %4 : vector<64x32xf32> to vector<8x8x32xf32>
    %cst_4 = arith.constant dense<0xFF800000> : vector<8x32xf32>
    %7 = vector.multi_reduction <maximumf>, %6, %cst_4 [1] : vector<8x8x32xf32> to vector<8x32xf32>
    %8 = vector.shape_cast %7 : vector<8x32xf32> to vector<8x1x32xf32>
    %9 = vector.broadcast %8 : vector<8x1x32xf32> to vector<8x8x32xf32>
    %10 = arith.subf %6, %9 : vector<8x8x32xf32>
    %11 = math.exp %10 : vector<8x8x32xf32>
    %cst_5 = arith.constant dense<0.000000e+00> : vector<8x32xf32>
    %12 = vector.multi_reduction <add>, %11, %cst_5 [1] : vector<8x8x32xf32> to vector<8x32xf32>
    %13 = vector.shape_cast %12 : vector<8x32xf32> to vector<8x1x32xf32>
    %14 = tpu.reciprocal %13 {approx = true} : vector<8x1x32xf32> -> vector<8x1x32xf32>
    %15 = arith.mulf %13, %14 : vector<8x1x32xf32>
    %cst_6 = arith.constant 2.000000e+00 : f32
    %16 = vector.broadcast %cst_6 : f32 to vector<8x1x32xf32>
    %17 = arith.subf %16, %15 : vector<8x1x32xf32>
    %18 = arith.mulf %14, %17 : vector<8x1x32xf32>
    %19 = vector.broadcast %18 : vector<8x1x32xf32> to vector<8x8x32xf32>
    %20 = arith.mulf %11, %19 : vector<8x8x32xf32>
    %21 = arith.mulf %5, %20 : vector<8x8x32xf32>
    %cst_7 = arith.constant dense<0.000000e+00> : vector<8x32xf32>
    %22 = vector.multi_reduction <add>, %21, %cst_7 [1] : vector<8x8x32xf32> to vector<8x32xf32>
    %23 = tpu.transpose %22, [1, 0] : vector<8x32xf32> -> vector<32x8xf32>
    %c0_8 = arith.constant 0 : index
    %c0_9 = arith.constant 0 : index
    %c0_10 = arith.constant 0 : index
    %24 = vector.load %arg4[%c0_8, %c0_9, %c0_10] : memref<1x32x8xf32, #tpu.memory_space<vmem>>, vector<1x32x8xf32>
    %25 = vector.shape_cast %24 : vector<1x32x8xf32> to vector<32x8xf32>
    %26 = vector.shape_cast %23 : vector<32x8xf32> to vector<1x32x8xf32>
    tpu.vector_store %arg4[%c0_8, %c0_9, %c0_10], %26 {strides = array<i32>} : memref<1x32x8xf32, #tpu.memory_space<vmem>>, vector<1x32x8xf32>,
    return
  }
  func.func @transform_0(%arg0: i32, %arg1: i32) -> (i32, i32, i32) {
    %c0_i32 = arith.constant 0 : i32
    %c0_i32_0 = arith.constant 0 : i32
    return %arg0, %c0_i32, %arg1 : i32, i32, i32
  }
  func.func @transform_1(%arg0: i32, %arg1: i32) -> (i32, i32) {
    %c0_i32 = arith.constant 0 : i32
    %c0_i32_0 = arith.constant 0 : i32
    %c0_i32_1 = arith.constant 0 : i32
    return %c0_i32, %c0_i32_0 : i32, i32
  }
  func.func @transform_2(%arg0: i32, %arg1: i32) -> (i32, i32, i32) {
    %c0_i32 = arith.constant 0 : i32
    %c0_i32_0 = arith.constant 0 : i32
    return %arg0, %c0_i32, %arg1 : i32, i32, i32
  }
}

</mosaic_0001>

<llo_original>
// kernel: attention_pooling_1d.1
$region0: #{attention_pooling_1d.1}
  #allocation0 [shape = 'u32[]', space=smem, size = 0x4, offset = 0x4, fixed_abs, tag = 'smem constant byte address 0x4 - core index']
  #allocation1 [shape = 'u32[144,128]{1,0:T(1,128)}', space=vmem, size = 0x12000, scoped, tag = 'internal scratch']
  %s0 = inlined_call_operand.vmem [shape: f32[2,32,64], index: 0, kind: input, shape index: {}]
  %s1 = inlined_call_operand.vmem [shape: f32[32,32], index: 1, kind: input, shape index: {}]
  %s2 = inlined_call_operand.vmem [shape: f32[2,32,8], index: 2, kind: output, shape index: {}]
  %s3 = sld [smem:[#allocation0]]
  $region41: #{attention_pooling_1d.1} parent=0
    _
  %s5 = ssub.s32 1, %s3
  %s6 = scalar_select 0, %s5, %s3
  loop: start=0, step=1, limit=4
  $region2: #{attention_pooling_1d.1} parent=0 // loop_pre_header
    _
  $region3: #{attention_pooling_1d.1} parent=0 // loop_header
    %s8 = sphi 0, %s12
    %p9 = scmp.ge.s32.totalorder %s8, 4
    %s15 = sphi 0, %s27
    %s16 = sphi 0, %s23
    %s17 = sphi 0, %s15
    %s18 = sphi 0, %s16
    %s19 = sphi 0, %s17
    %s20 = sphi 0, %s18
    %s32 = sphi 0, %s34
    %s35 = sphi 0, %s32
    %s36 = sphi 0, %s35
    %s52 = sphi 0, %s36
    %s56 = sphi 0, %s56
    %s58 = sphi 0, %s56
    %s59 = sphi 0, %s58
    %s73 = sphi 0, %s59
    %s81 = sphi 0, %s83
    %s84 = sphi 0, %s81
    %s85 = sphi 0, %s84
    %s101 = sphi 0, %s85
  $region4: #{attention_pooling_1d.1} parent=0 // loop_header_branch
    %11 = sbr.rel (%p9) target = $region8
  $region5: #{attention_pooling_1d.1} parent=0 // loop_body
    %s13 = ssub.s32 %s8, 1
    %s14 = ssub.s32 %s8, 2
    %s21 = sadd.s32 1, %s16
    %p22 = scmp.ge.s32.totalorder %s21, 1
    %s23 = scalar_select %p22, 0, %s21
    %s24 = sadd.s32 1, %s15
    %s25 = scalar_select %p22, %s24, %s15
    %p26 = scmp.ge.s32.totalorder %s25, 2
    %s27 = scalar_select %p26, 0, %s25
    %s28 = ssub.s32 %s15, %s27
    %s29 = ssub.s32 %s16, %s23
    %s30 = sor.u32 %s28, %s29
    %p31 = scmp.eq.s32.totalorder %s30, 0
    %s33 = sadd.s32 %s32, 1
    %s34 = scalar_select %p31, %s32, %s33
    %p37 = pneg %p31
    %p38 = scmp.eq.s32.totalorder %s8, 1
    %p39 = por %p37, %p38
    %p40 = scmp.ne.s32.totalorder %s32, %s35
    %p41 = scmp.eq.s32.totalorder %s8, 0
    %p42 = por %p40, %p41
    %p43 = scmp.ne.s32.totalorder %s32, %s35
    %p44 = scmp.eq.s32.totalorder %s13, 1
    %p45 = por %p43, %p44
    %p46 = scmp.ne.s32.totalorder %s35, %s36
    %p47 = scmp.eq.s32.totalorder %s13, 0
    %p48 = por %p46, %p47
    %p49 = scmp.ne.s32.totalorder %s35, %s36
    %p50 = scmp.eq.s32.totalorder %s14, 1
    %p51 = por %p49, %p50
    %p53 = scmp.ne.s32.totalorder %s36, %s52
    %p54 = scmp.eq.s32.totalorder %s14, 0
    %p55 = por %p53, %p54
    %s57 = sadd.s32 %s56, 1
    %p60 = scmp.eq.s32.totalorder %s8, 1
    %p61 = scmp.ne.s32.totalorder %s56, %s58
    %p62 = scmp.eq.s32.totalorder %s8, 0
    %p63 = por %p61, %p62
    %p64 = scmp.ne.s32.totalorder %s56, %s58
    %p65 = scmp.eq.s32.totalorder %s13, 1
    %p66 = por %p64, %p65
    %p67 = scmp.ne.s32.totalorder %s58, %s59
    %p68 = scmp.eq.s32.totalorder %s13, 0
    %p69 = por %p67, %p68
    %p70 = scmp.ne.s32.totalorder %s58, %s59
    %p71 = scmp.eq.s32.totalorder %s14, 1
    %p72 = por %p70, %p71
    %p74 = scmp.ne.s32.totalorder %s59, %s73
    %p75 = scmp.eq.s32.totalorder %s14, 0
    %p76 = por %p74, %p75
    %s77 = ssub.s32 %s15, %s27
    %s78 = ssub.s32 %s16, %s23
    %s79 = sor.u32 %s77, %s78
    %p80 = scmp.eq.s32.totalorder %s79, 0
    %s82 = sadd.s32 %s81, 1
    %s83 = scalar_select %p80, %s81, %s82
    %p86 = pneg %p80
    %p87 = scmp.eq.s32.totalorder %s8, 1
    %p88 = por %p86, %p87
    %p89 = scmp.ne.s32.totalorder %s81, %s84
    %p90 = scmp.eq.s32.totalorder %s8, 0
    %p91 = por %p89, %p90
    %p92 = scmp.ne.s32.totalorder %s81, %s84
    %p93 = scmp.eq.s32.totalorder %s13, 1
    %p94 = por %p92, %p93
    %p95 = scmp.ne.s32.totalorder %s84, %s85
    %p96 = scmp.eq.s32.totalorder %s13, 0
    %p97 = por %p95, %p96
    %p98 = scmp.ne.s32.totalorder %s84, %s85
    %p99 = scmp.eq.s32.totalorder %s14, 1
    %p100 = por %p98, %p99
    %p102 = scmp.ne.s32.totalorder %s85, %s101
    %p103 = scmp.eq.s32.totalorder %s14, 0
    %p104 = por %p102, %p103
    %p105 = scmp.le.s32.totalorder 1, %s8
    %p106 = scmp.lt.s32.totalorder %s8, 3
    %p107 = pnand %p105, %p106
    %p108 = pneg %p107
    // Predicated region
    $region9: #{attention_pooling_1d.1} parent=5 // pred_check
      _
    $region10: #{attention_pooling_1d.1} parent=5 // pred_check_branch
      %110 = sbr.rel (%p107) target = $region12
    $region11: #{attention_pooling_1d.1} parent=5 // pred_region
      %s111 = ssub.s32 %s8, 1
      // Predicated region
      $region13: #{attention_pooling_1d.1} parent=11 // pred_check
        %p112 = pneg %p69
      $region14: #{attention_pooling_1d.1} parent=11 // pred_check_branch
        %114 = sbr.rel (%p112) target = $region16
      $region15: #{attention_pooling_1d.1} parent=11 // pred_region
        _
      $region16: #{attention_pooling_1d.1} parent=11 // pred_fallthru
        _
    $region12: #{attention_pooling_1d.1} parent=5 // pred_fallthru
      _
    %p115 = scmp.lt.s32.totalorder %s8, 2
    // Predicated region
    $region17: #{attention_pooling_1d.1} parent=5 // pred_check
      %p116 = pneg %p115
    $region18: #{attention_pooling_1d.1} parent=5 // pred_check_branch
      %118 = sbr.rel (%p116) target = $region20
    $region19: #{attention_pooling_1d.1} parent=5 // pred_region
      // Predicated region
      $region21: #{attention_pooling_1d.1} parent=19 // pred_check
        %p119 = pneg %p42
      $region22: #{attention_pooling_1d.1} parent=19 // pred_check_branch
        %121 = sbr.rel (%p119) target = $region24
      $region23: #{attention_pooling_1d.1} parent=19 // pred_region
        %p122 = scmp.lt.s32.totalorder %s15, 1
        %s123 = scalar_select %p122, %s15, 1
        %p124 = scmp.lt.s32.totalorder %s16, 0
        %s125 = scalar_select %p124, %s16, 0
        %s126 = smul.addr %s123, 4
        %s127 = sadd.s32 %s125, %s126
        %s128 = smul.addr %s127, 8
        %s129 = scalar_lea.vmem %s0, %s128
      $region24: #{attention_pooling_1d.1} parent=19 // pred_fallthru
        _
    $region20: #{attention_pooling_1d.1} parent=5 // pred_fallthru
      _
    %p130 = scmp.le.s32.totalorder 1, %s8
    %p131 = scmp.lt.s32.totalorder %s8, 3
    %p132 = pnand %p130, %p131
    %p133 = pneg %p132
    // Predicated region
    $region25: #{attention_pooling_1d.1} parent=5 // pred_check
      _
    $region26: #{attention_pooling_1d.1} parent=5 // pred_check_branch
      %135 = sbr.rel (%p132) target = $region28
    $region27: #{attention_pooling_1d.1} parent=5 // pred_region
      %s136 = ssub.s32 %s8, 1
      %p137 = scmp.lt.s32.totalorder %s17, 1
      %s138 = scalar_select %p137, %s17, 1
      %p139 = scmp.lt.s32.totalorder %s18, 0
      %s140 = scalar_select %p139, %s18, 0
      %s141 = smul.addr %s138, 4
      %s142 = sadd.s32 %s140, %s141
      %s143 = smul.addr %s142, 8
      %s144 = scalar_lea.vmem %s0, %s143
      %p145 = pneg %p48
      %p146 = pneg %p45
      %p147 = pneg %p69
      %p148 = pneg %p66
      %p149 = pneg %p97
      %p150 = pneg %p94
      %p151 = scmp.lt.s32.totalorder %s17, 1
      %s152 = scalar_select %p151, %s17, 1
      %p153 = scmp.lt.s32.totalorder %s18, 0
      %s154 = scalar_select %p153, %s18, 0
      %s155 = smul.addr %s152, 4
      %s156 = sadd.s32 %s154, %s155
      %s157 = smul.addr %s156, 8
      %s158 = scalar_lea.vmem %s2, %s157
      %p159 = scmp.lt.s32.totalorder %s17, 1
      %s160 = scalar_select %p159, %s17, 1
      %p161 = scmp.lt.s32.totalorder %s18, 0
      %s162 = scalar_select %p161, %s18, 0
      %s163 = smul.addr %s160, 4
      %s164 = sadd.s32 %s162, %s163
      %s165 = smul.addr %s164, 8
      %s166 = scalar_lea.vmem %s0, %s165
      %p167 = scmp.lt.s32.totalorder %s17, 1
      %s168 = scalar_select %p167, %s17, 1
      %p169 = scmp.lt.s32.totalorder %s18, 0
      %s170 = scalar_select %p169, %s18, 0
      %s171 = smul.addr %s168, 4
      %s172 = sadd.s32 %s170, %s171
      %s173 = smul.addr %s172, 8
      %s174 = scalar_lea.vmem %s2, %s173
      %v175 = vld [vmem:[%s166] sm:$0xff]
      %v176 = vld [vmem:[%s166 + $0x8] sm:$0xff]
      %v177 = vld [vmem:[%s166 + $0x10] sm:$0xff]
      %v178 = vld [vmem:[%s166 + $0x18] sm:$0xff]
      %179 = vxpose.xlu0.b32.start [1/16] %v175, 128
      %180 = vxpose.xlu0.b32.cont [2/16] %v176, 128
      %181 = vxpose.xlu0.b32.cont [3/16] %v177, 128
      %182 = vxpose.xlu0.b32.cont [4/16] %v178, 128
      %183 = vxpose.xlu0.b32.cont [5/16] 0.0, 128
      %184 = vxpose.xlu0.b32.cont [6/16] 0.0, 128
      %185 = vxpose.xlu0.b32.cont [7/16] 0.0, 128
      %186 = vxpose.xlu0.b32.cont [8/16] 0.0, 128
      %187 = vxpose.xlu0.b32.cont [9/16] 0.0, 128
      %188 = vxpose.xlu0.b32.cont [10/16] 0.0, 128
      %189 = vxpose.xlu0.b32.cont [11/16] 0.0, 128
      %190 = vxpose.xlu0.b32.cont [12/16] 0.0, 128
      %191 = vxpose.xlu0.b32.cont [13/16] 0.0, 128
      %192 = vxpose.xlu0.b32.cont [14/16] 0.0, 128
      %193 = vxpose.xlu0.b32.cont [15/16] 0.0, 128
      %194 = vxpose.xlu0.b32.end [16/16] 0.0, 128
      %v195 = vpop.trf.xlu0
      %v196 = vpop.trf.xlu0
      %v197 = vpop.trf.xlu0
      %v198 = vpop.trf.xlu0
      %v199 = vpop.trf.xlu0
      %v200 = vpop.trf.xlu0
      %v201 = vpop.trf.xlu0
      %v202 = vpop.trf.xlu0
      %v203 = vpop.trf.xlu0
      %v204 = vpop.trf.xlu0
      %v205 = vpop.trf.xlu0
      %v206 = vpop.trf.xlu0
      %v207 = vpop.trf.xlu0
      %v208 = vpop.trf.xlu0
      %v209 = vpop.trf.xlu0
      %v210 = vpop.trf.xlu0
      %v211 = vld [vmem:[%s1] sm:$0xff]
      %v212 = vld [vmem:[%s1 + $0x8] sm:$0xff]
      %v213 = vld [vmem:[%s1 + $0x10] sm:$0xff]
      %v214 = vld [vmem:[%s1 + $0x18] sm:$0xff]
      %vm215 = vcmask 261120
      %v217 = vsel %vm215, %v195, 0
      %v220 = vsel %vm215, %v196, 0
      %v223 = vsel %vm215, %v197, 0
      %v226 = vsel %vm215, %v198, 0
      %v229 = vsel %vm215, %v199, 0
      %v232 = vsel %vm215, %v200, 0
      %v235 = vsel %vm215, %v201, 0
      %v238 = vsel %vm215, %v202, 0
      %240 = vmatprep.subr.mxu0 0.0
      %241 = vmatpush1.msra.mxu0 0.0
      %242 = vmatprep.subr.mxu0 0.0
      %243 = vmatpush1.msra.mxu0 0.0
      %244 = vmatprep.subr.mxu0 0.0
      %245 = vmatpush1.msra.mxu0 0.0
      %246 = vmatprep.subr.mxu0 0.0
      %247 = vmatpush1.msra.mxu0 0.0
      %248 = vmatprep.subr.mxu0 0.0
      %249 = vmatpush1.msra.mxu0 0.0
      %250 = vmatprep.subr.mxu0 0.0
      %251 = vmatpush1.msra.mxu0 0.0
      %252 = vmatprep.subr.mxu0 0.0
      %253 = vmatpush1.msra.mxu0 0.0
      %254 = vmatprep.subr.mxu0 0.0
      %255 = vmatpush1.msra.mxu0 0.0
      %256 = vmatprep.subr.mxu0 0.0
      %257 = vmatpush1.msra.mxu0 0.0
      %258 = vmatprep.subr.mxu0 0.0
      %259 = vmatpush1.msra.mxu0 0.0
      %260 = vmatprep.subr.mxu0 0.0
      %261 = vmatpush1.msra.mxu0 0.0
      %262 = vmatprep.subr.mxu0 0.0
      %263 = vmatpush1.msra.mxu0 0.0
      %264 = vmatprep.subr.mxu0 0.0
      %265 = vmatpush1.msra.mxu0 %v214
      %266 = vmatprep.subr.mxu0 0.0
      %267 = vmatpush1.msra.mxu0 %v213
      %268 = vmatprep.subr.mxu0 0.0
      %269 = vmatpush1.msra.mxu0 %v212
      %270 = vmatprep.subr.mxu0 0.0
      %271 = vmatpush1.msra.mxu0 %v211
      %272 = vmatprep.subr.mxu0 0.0
      %273 = vmatpush2.msra.mxu0 0.0
      %274 = vmatprep.subr.mxu0 0.0
      %275 = vmatpush2.msra.mxu0 0.0
      %276 = vmatprep.subr.mxu0 0.0
      %277 = vmatpush2.msra.mxu0 0.0
      %278 = vmatprep.subr.mxu0 0.0
      %279 = vmatpush2.msra.mxu0 0.0
      %280 = vmatprep.subr.mxu0 0.0
      %281 = vmatpush2.msra.mxu0 0.0
      %282 = vmatprep.subr.mxu0 0.0
      %283 = vmatpush2.msra.mxu0 0.0
      %284 = vmatprep.subr.mxu0 0.0
      %285 = vmatpush2.msra.mxu0 0.0
      %286 = vmatprep.subr.mxu0 0.0
      %287 = vmatpush2.msra.mxu0 0.0
      %288 = vmatprep.subr.mxu0 0.0
      %289 = vmatpush2.msra.mxu0 0.0
      %290 = vmatprep.subr.mxu0 0.0
      %291 = vmatpush2.msra.mxu0 0.0
      %292 = vmatprep.subr.mxu0 0.0
      %293 = vmatpush2.msra.mxu0 0.0
      %294 = vmatprep.subr.mxu0 0.0
      %295 = vmatpush2.msra.mxu0 0.0
      %296 = vmatprep.subr.mxu0 0.0
      %297 = vmatpush2.msra.mxu0 0.0
      %298 = vmatprep.subr.mxu0 0.0
      %299 = vmatpush2.msra.mxu0 0.0
      %300 = vmatprep.subr.mxu0 0.0
      %301 = vmatpush2.msra.mxu0 0.0
      %302 = vmatprep.subr.mxu0 0.0
      %303 = vmatpush2.msra.mxu0 0.0
      %304 = vmatprep.mubr.f32.mxu0 0.0
      %305 = vmatmul.mubr.f32.gmra.mxu0 %v217
      %v306 = vpop.f32.mrf.mxu0
      %v307 = vadd.f32 0.0, %v306
      %v308 = vpop.f32.mrf.mxu0
      %309 = vmatprep.mubr.f32.mxu0 0.0
      %310 = vmatmul.mubr.f32.gmra.mxu0 %v220
      %v311 = vpop.f32.mrf.mxu0
      %v312 = vadd.f32 0.0, %v311
      %v313 = vpop.f32.mrf.mxu0
      %314 = vmatprep.mubr.f32.mxu0 0.0
      %315 = vmatmul.mubr.f32.gmra.mxu0 %v223
      %v316 = vpop.f32.mrf.mxu0
      %v317 = vadd.f32 0.0, %v316
      %v318 = vpop.f32.mrf.mxu0
      %319 = vmatprep.mubr.f32.mxu0 0.0
      %320 = vmatmul.mubr.f32.gmra.mxu0 %v226
      %v321 = vpop.f32.mrf.mxu0
      %v322 = vadd.f32 0.0, %v321
      %v323 = vpop.f32.mrf.mxu0
      %324 = vmatprep.mubr.f32.mxu0 0.0
      %325 = vmatmul.mubr.f32.gmra.mxu0 %v229
      %v326 = vpop.f32.mrf.mxu0
      %v327 = vadd.f32 0.0, %v326
      %v328 = vpop.f32.mrf.mxu0
      %329 = vmatprep.mubr.f32.mxu0 0.0
      %330 = vmatmul.mubr.f32.gmra.mxu0 %v232
      %v331 = vpop.f32.mrf.mxu0
      %v332 = vadd.f32 0.0, %v331
      %v333 = vpop.f32.mrf.mxu0
      %334 = vmatprep.mubr.f32.mxu0 0.0
      %335 = vmatmul.mubr.f32.gmra.mxu0 %v235
      %v336 = vpop.f32.mrf.mxu0
      %v337 = vadd.f32 0.0, %v336
      %v338 = vpop.f32.mrf.mxu0
      %339 = vmatprep.mubr.f32.mxu0 0.0
      %340 = vmatmul.mubr.f32.gmra.mxu0 %v238
      %v341 = vpop.f32.mrf.mxu0
      %v342 = vadd.f32 0.0, %v341
      %v343 = vpop.f32.mrf.mxu0
      %344 = vdwg.mxu0
      %v345 = vsel %vm215, %v307, -inf
      %v346 = vrot.slane %v345, 4
      %v347 = vmax.f32 %v345, %v346
      %v348 = vrot.slane %v347, 2
      %v349 = vmax.f32 %v347, %v348
      %v350 = vrot.slane %v349, 1
      %v351 = vmax.f32 %v349, %v350
      %v352 = vsel %vm215, %v312, -inf
      %v353 = vrot.slane %v352, 4
      %v354 = vmax.f32 %v352, %v353
      %v355 = vrot.slane %v354, 2
      %v356 = vmax.f32 %v354, %v355
      %v357 = vrot.slane %v356, 1
      %v358 = vmax.f32 %v356, %v357
      %v359 = vsel %vm215, %v317, -inf
      %v360 = vrot.slane %v359, 4
      %v361 = vmax.f32 %v359, %v360
      %v362 = vrot.slane %v361, 2
      %v363 = vmax.f32 %v361, %v362
      %v364 = vrot.slane %v363, 1
      %v365 = vmax.f32 %v363, %v364
      %v366 = vsel %vm215, %v322, -inf
      %v367 = vrot.slane %v366, 4
      %v368 = vmax.f32 %v366, %v367
      %v369 = vrot.slane %v368, 2
      %v370 = vmax.f32 %v368, %v369
      %v371 = vrot.slane %v370, 1
      %v372 = vmax.f32 %v370, %v371
      %v373 = vsel %vm215, %v327, -inf
      %v374 = vrot.slane %v373, 4
      %v375 = vmax.f32 %v373, %v374
      %v376 = vrot.slane %v375, 2
      %v377 = vmax.f32 %v375, %v376
      %v378 = vrot.slane %v377, 1
      %v379 = vmax.f32 %v377, %v378
      %v380 = vsel %vm215, %v332, -inf
      %v381 = vrot.slane %v380, 4
      %v382 = vmax.f32 %v380, %v381
      %v383 = vrot.slane %v382, 2
      %v384 = vmax.f32 %v382, %v383
      %v385 = vrot.slane %v384, 1
      %v386 = vmax.f32 %v384, %v385
      %v387 = vsel %vm215, %v337, -inf
      %v388 = vrot.slane %v387, 4
      %v389 = vmax.f32 %v387, %v388
      %v390 = vrot.slane %v389, 2
      %v391 = vmax.f32 %v389, %v390
      %v392 = vrot.slane %v391, 1
      %v393 = vmax.f32 %v391, %v392
      %v394 = vsel %vm215, %v342, -inf
      %v395 = vrot.slane %v394, 4
      %v396 = vmax.f32 %v394, %v395
      %v397 = vrot.slane %v396, 2
      %v398 = vmax.f32 %v396, %v397
      %v399 = vrot.slane %v398, 1
      %v400 = vmax.f32 %v398, %v399
      %v401 = vsub.f32 %v307, %v351
      %v402 = vsub.f32 %v312, %v358
      %v403 = vsub.f32 %v317, %v365
      %v404 = vsub.f32 %v322, %v372
      %v405 = vsub.f32 %v327, %v379
      %v406 = vsub.f32 %v332, %v386
      %v407 = vsub.f32 %v337, %v393
      %v408 = vsub.f32 %v342, %v400
      %v409 = vmul.f32 %v401, 1.442695
      %v410 = vpow.pop %v409
      %v411 = vmul.f32 %v402, 1.442695
      %v412 = vpow.pop %v411
      %v413 = vmul.f32 %v403, 1.442695
      %v414 = vpow.pop %v413
      %v415 = vmul.f32 %v404, 1.442695
      %v416 = vpow.pop %v415
      %v417 = vmul.f32 %v405, 1.442695
      %v418 = vpow.pop %v417
      %v419 = vmul.f32 %v406, 1.442695
      %v420 = vpow.pop %v419
      %v421 = vmul.f32 %v407, 1.442695
      %v422 = vpow.pop %v421
      %v423 = vmul.f32 %v408, 1.442695
      %v424 = vpow.pop %v423
      %v425 = vsel %vm215, %v410, 0.0
      %v426 = vrot.slane %v425, 4
      %v427 = vadd.f32 %v425, %v426
      %v428 = vrot.slane %v427, 2
      %v429 = vadd.f32 %v427, %v428
      %v430 = vrot.slane %v429, 1
      %v431 = vadd.f32 %v429, %v430
      %v432 = vsel %vm215, %v412, 0.0
      %v433 = vrot.slane %v432, 4
      %v434 = vadd.f32 %v432, %v433
      %v435 = vrot.slane %v434, 2
      %v436 = vadd.f32 %v434, %v435
      %v437 = vrot.slane %v436, 1
      %v438 = vadd.f32 %v436, %v437
      %v439 = vsel %vm215, %v414, 0.0
      %v440 = vrot.slane %v439, 4
      %v441 = vadd.f32 %v439, %v440
      %v442 = vrot.slane %v441, 2
      %v443 = vadd.f32 %v441, %v442
      %v444 = vrot.slane %v443, 1
      %v445 = vadd.f32 %v443, %v444
      %v446 = vsel %vm215, %v416, 0.0
      %v447 = vrot.slane %v446, 4
      %v448 = vadd.f32 %v446, %v447
      %v449 = vrot.slane %v448, 2
      %v450 = vadd.f32 %v448, %v449
      %v451 = vrot.slane %v450, 1
      %v452 = vadd.f32 %v450, %v451
      %v453 = vsel %vm215, %v418, 0.0
      %v454 = vrot.slane %v453, 4
      %v455 = vadd.f32 %v453, %v454
      %v456 = vrot.slane %v455, 2
      %v457 = vadd.f32 %v455, %v456
      %v458 = vrot.slane %v457, 1
      %v459 = vadd.f32 %v457, %v458
      %v460 = vsel %vm215, %v420, 0.0
      %v461 = vrot.slane %v460, 4
      %v462 = vadd.f32 %v460, %v461
      %v463 = vrot.slane %v462, 2
      %v464 = vadd.f32 %v462, %v463
      %v465 = vrot.slane %v464, 1
      %v466 = vadd.f32 %v464, %v465
      %v467 = vsel %vm215, %v422, 0.0
      %v468 = vrot.slane %v467, 4
      %v469 = vadd.f32 %v467, %v468
      %v470 = vrot.slane %v469, 2
      %v471 = vadd.f32 %v469, %v470
      %v472 = vrot.slane %v471, 1
      %v473 = vadd.f32 %v471, %v472
      %v474 = vsel %vm215, %v424, 0.0
      %v475 = vrot.slane %v474, 4
      %v476 = vadd.f32 %v474, %v475
      %v477 = vrot.slane %v476, 2
      %v478 = vadd.f32 %v476, %v477
      %v479 = vrot.slane %v478, 1
      %v480 = vadd.f32 %v478, %v479
      %v481 = vrcp.pop %v431
      %v482 = vrcp.pop %v438
      %v483 = vrcp.pop %v445
      %v484 = vrcp.pop %v452
      %v485 = vrcp.pop %v459
      %v486 = vrcp.pop %v466
      %v487 = vrcp.pop %v473
      %v488 = vrcp.pop %v480
      %v489 = vmul.f32 %v431, %v481
      %v490 = vmul.f32 %v438, %v482
      %v491 = vmul.f32 %v445, %v483
      %v492 = vmul.f32 %v452, %v484
      %v493 = vmul.f32 %v459, %v485
      %v494 = vmul.f32 %v466, %v486
      %v495 = vmul.f32 %v473, %v487
      %v496 = vmul.f32 %v480, %v488
      %v497 = vsub.f32 2.0, %v489
      %v498 = vsub.f32 2.0, %v490
      %v499 = vsub.f32 2.0, %v491
      %v500 = vsub.f32 2.0, %v492
      %v501 = vsub.f32 2.0, %v493
      %v502 = vsub.f32 2.0, %v494
      %v503 = vsub.f32 2.0, %v495
      %v504 = vsub.f32 2.0, %v496
      %v505 = vmul.f32 %v481, %v497
      %v506 = vmul.f32 %v482, %v498
      %v507 = vmul.f32 %v483, %v499
      %v508 = vmul.f32 %v484, %v500
      %v509 = vmul.f32 %v485, %v501
      %v510 = vmul.f32 %v486, %v502
      %v511 = vmul.f32 %v487, %v503
      %v512 = vmul.f32 %v488, %v504
      %v513 = vmul.f32 %v410, %v505
      %v514 = vmul.f32 %v412, %v506
      %v515 = vmul.f32 %v414, %v507
      %v516 = vmul.f32 %v416, %v508
      %v517 = vmul.f32 %v418, %v509
      %v518 = vmul.f32 %v420, %v510
      %v519 = vmul.f32 %v422, %v511
      %v520 = vmul.f32 %v424, %v512
      %v521 = vmul.f32 %v195, %v513
      %v522 = vmul.f32 %v196, %v514
      %v523 = vmul.f32 %v197, %v515
      %v524 = vmul.f32 %v198, %v516
      %v525 = vmul.f32 %v199, %v517
      %v526 = vmul.f32 %v200, %v518
      %v527 = vmul.f32 %v201, %v519
      %v528 = vmul.f32 %v202, %v520
      %v529 = vsel %vm215, %v521, 0.0
      %v530 = vrot.slane %v529, 4
      %v531 = vadd.f32 %v529, %v530
      %v532 = vrot.slane %v531, 2
      %v533 = vadd.f32 %v531, %v532
      %v534 = vrot.slane %v533, 1
      %v535 = vadd.f32 %v533, %v534
      %v536 = vsel %vm215, %v522, 0.0
      %v537 = vrot.slane %v536, 4
      %v538 = vadd.f32 %v536, %v537
      %v539 = vrot.slane %v538, 2
      %v540 = vadd.f32 %v538, %v539
      %v541 = vrot.slane %v540, 1
      %v542 = vadd.f32 %v540, %v541
      %v543 = vsel %vm215, %v523, 0.0
      %v544 = vrot.slane %v543, 4
      %v545 = vadd.f32 %v543, %v544
      %v546 = vrot.slane %v545, 2
      %v547 = vadd.f32 %v545, %v546
      %v548 = vrot.slane %v547, 1
      %v549 = vadd.f32 %v547, %v548
      %v550 = vsel %vm215, %v524, 0.0
      %v551 = vrot.slane %v550, 4
      %v552 = vadd.f32 %v550, %v551
      %v553 = vrot.slane %v552, 2
      %v554 = vadd.f32 %v552, %v553
      %v555 = vrot.slane %v554, 1
      %v556 = vadd.f32 %v554, %v555
      %v557 = vsel %vm215, %v525, 0.0
      %v558 = vrot.slane %v557, 4
      %v559 = vadd.f32 %v557, %v558
      %v560 = vrot.slane %v559, 2
      %v561 = vadd.f32 %v559, %v560
      %v562 = vrot.slane %v561, 1
      %v563 = vadd.f32 %v561, %v562
      %v564 = vsel %vm215, %v526, 0.0
      %v565 = vrot.slane %v564, 4
      %v566 = vadd.f32 %v564, %v565
      %v567 = vrot.slane %v566, 2
      %v568 = vadd.f32 %v566, %v567
      %v569 = vrot.slane %v568, 1
      %v570 = vadd.f32 %v568, %v569
      %v571 = vsel %vm215, %v527, 0.0
      %v572 = vrot.slane %v571, 4
      %v573 = vadd.f32 %v571, %v572
      %v574 = vrot.slane %v573, 2
      %v575 = vadd.f32 %v573, %v574
      %v576 = vrot.slane %v575, 1
      %v577 = vadd.f32 %v575, %v576
      %v578 = vsel %vm215, %v528, 0.0
      %v579 = vrot.slane %v578, 4
      %v580 = vadd.f32 %v578, %v579
      %v581 = vrot.slane %v580, 2
      %v582 = vadd.f32 %v580, %v581
      %v583 = vrot.slane %v582, 1
      %v584 = vadd.f32 %v582, %v583
      %vm593 = vcmask 1041409
      %v594 = vsel %vm593, %v542, %v535
      %vm595 = vcmask 1042434
      %v596 = vsel %vm595, %v549, %v594
      %vm597 = vcmask 1043459
      %v598 = vsel %vm597, %v556, %v596
      %vm599 = vcmask 1044484
      %v600 = vsel %vm599, %v563, %v598
      %vm601 = vcmask 1045509
      %v602 = vsel %vm601, %v570, %v600
      %vm603 = vcmask 1046534
      %v604 = vsel %vm603, %v577, %v602
      %vm605 = vcmask 1047559
      %v606 = vsel %vm605, %v584, %v604
      %608 = vxpose.xlu0.b32.start [1/16] %v606, 128
      %609 = vxpose.xlu0.b32.cont [2/16] 0.0, 128
      %610 = vxpose.xlu0.b32.cont [3/16] 0.0, 128
      %611 = vxpose.xlu0.b32.cont [4/16] 0.0, 128
      %612 = vxpose.xlu0.b32.cont [5/16] 0.0, 128
      %613 = vxpose.xlu0.b32.cont [6/16] 0.0, 128
      %614 = vxpose.xlu0.b32.cont [7/16] 0.0, 128
      %615 = vxpose.xlu0.b32.cont [8/16] 0.0, 128
      %616 = vxpose.xlu0.b32.cont [9/16] 0.0, 128
      %617 = vxpose.xlu0.b32.cont [10/16] 0.0, 128
      %618 = vxpose.xlu0.b32.cont [11/16] 0.0, 128
      %619 = vxpose.xlu0.b32.cont [12/16] 0.0, 128
      %620 = vxpose.xlu0.b32.cont [13/16] 0.0, 128
      %621 = vxpose.xlu0.b32.cont [14/16] 0.0, 128
      %622 = vxpose.xlu0.b32.cont [15/16] 0.0, 128
      %623 = vxpose.xlu0.b32.end [16/16] 0.0, 128
      %v624 = vpop.trf.xlu0
      %v625 = vpop.trf.xlu0
      %v626 = vpop.trf.xlu0
      %v627 = vpop.trf.xlu0
      %v628 = vpop.trf.xlu0
      %v629 = vpop.trf.xlu0
      %v630 = vpop.trf.xlu0
      %v631 = vpop.trf.xlu0
      %v632 = vpop.trf.xlu0
      %v633 = vpop.trf.xlu0
      %v634 = vpop.trf.xlu0
      %v635 = vpop.trf.xlu0
      %v636 = vpop.trf.xlu0
      %v637 = vpop.trf.xlu0
      %v638 = vpop.trf.xlu0
      %v639 = vpop.trf.xlu0
      %vm640 = vcmask 64512
      %641 = vst.msk [vmem:[%s174] sm:$0xff] %vm640, %v624
      %642 = vst.msk [vmem:[%s174 + $0x8] sm:$0xff] %vm640, %v625
      %643 = vst.msk [vmem:[%s174 + $0x10] sm:$0xff] %vm640, %v626
      %644 = vst.msk [vmem:[%s174 + $0x18] sm:$0xff] %vm640, %v627
      %p645 = scmp.lt.s32.totalorder %s17, 1
      %s646 = scalar_select %p645, %s17, 1
      %p647 = scmp.lt.s32.totalorder %s18, 0
      %s648 = scalar_select %p647, %s18, 0
      %s649 = smul.addr %s646, 4
      %s650 = sadd.s32 %s648, %s649
      %s651 = smul.addr %s650, 8
      %s652 = scalar_lea.vmem %s2, %s651
      // Predicated region
      $region29: #{attention_pooling_1d.1} parent=27 // pred_check
        %p653 = pneg %p94
      $region30: #{attention_pooling_1d.1} parent=27 // pred_check_branch
        %655 = sbr.rel (%p653) target = $region32
      $region31: #{attention_pooling_1d.1} parent=27 // pred_region
        _
      $region32: #{attention_pooling_1d.1} parent=27 // pred_fallthru
        _
    $region28: #{attention_pooling_1d.1} parent=5 // pred_fallthru
      _
    %p656 = scmp.le.s32.totalorder 2, %s8
    // Predicated region
    $region33: #{attention_pooling_1d.1} parent=5 // pred_check
      %p657 = pneg %p656
    $region34: #{attention_pooling_1d.1} parent=5 // pred_check_branch
      %659 = sbr.rel (%p657) target = $region36
    $region35: #{attention_pooling_1d.1} parent=5 // pred_region
      %s660 = ssub.s32 %s8, 2
      // Predicated region
      $region37: #{attention_pooling_1d.1} parent=35 // pred_check
        %p661 = pneg %p100
      $region38: #{attention_pooling_1d.1} parent=35 // pred_check_branch
        %663 = sbr.rel (%p661) target = $region40
      $region39: #{attention_pooling_1d.1} parent=35 // pred_region
        %p664 = scmp.lt.s32.totalorder %s19, 1
        %s665 = scalar_select %p664, %s19, 1
        %p666 = scmp.lt.s32.totalorder %s20, 0
        %s667 = scalar_select %p666, %s20, 0
        %s668 = smul.addr %s665, 4
        %s669 = sadd.s32 %s667, %s668
        %s670 = smul.addr %s669, 8
        %s671 = scalar_lea.vmem %s2, %s670
      $region40: #{attention_pooling_1d.1} parent=35 // pred_fallthru
        _
    $region36: #{attention_pooling_1d.1} parent=5 // pred_fallthru
      _
  $region6: #{attention_pooling_1d.1} parent=0 // loop_footer
    %s12 = sadd.s32 1, %s8
  $region7: #{attention_pooling_1d.1} parent=0 // loop_footer_branch
    %7 = sbr.rel target = $region3
  $region8: #{attention_pooling_1d.1} parent=0 // loop_exit
    _

</llo_original>
